<compile_context>
chip_gen: v6e
topology: v6e:2x2x1
jax: 0.10.0
libtpu: 0.0.40
codegen_flags: <defaults>
</compile_context>

<pallas_src>
import functools
import math

import jax
import jax.numpy as jnp
from jax import lax
from jax.experimental import pallas as pl
from jax.experimental.pallas import tpu as pltpu


_HALF_LOG_2PI = 0.5 * math.log(2.0 * math.pi)
_STIRLING_MIN_Z = 5.0   # Stirling series error is f32-negligible for z >= 5
_MAX_SHIFT = 8          # safety cap on the recurrence length


# ----------------------------- in-kernel math helpers -----------------------------

def _leaky_relu(x, negative_slope=0.01):
    return jnp.where(x >= 0.0, x, negative_slope * x)


def _softplus(x):
    # Numerically stable softplus: max(x, 0) + log1p(exp(-|x|))
    return jnp.maximum(x, 0.0) + jnp.log1p(jnp.exp(-jnp.abs(x)))


def _recip_refined(x):
    # Approx EUP reciprocal + one Newton step (2 VALU FMAs): ~full f32 precision
    # while moving the divide's refinement off the saturating EUP onto the VALU.
    r = pl.reciprocal(x, approx=True)
    return r * (2.0 - x * r)


def _lgamma_digamma(x, n_shift):
    """lgamma(x) and digamma(x) for x > 0 via an n_shift recurrence + Stirling.

      lgamma(x)  = lgamma(x+N)  - log(x*(x+1)*...*(x+N-1))
      digamma(x) = digamma(x+N) - sum_k 1/(x+k)

    n_shift is chosen at trace time from a provable lower bound on x so that
    z = x + n_shift >= ~5 (f32-negligible Stirling error); e.g. the a0 call
    needs no shift at all when A*constant >= 5.  The shift uses a single log of
    the running product (1 EUP log total instead of N) and Newton-refined
    approx reciprocals — kernel 1's saturating unit is the EUP, so every
    divide/log removed here is wall-clock.
    """
    if n_shift > 0:
        z = x
        prod = x
        rsum = _recip_refined(x)
        for _ in range(n_shift - 1):
            z = z + 1.0
            prod = prod * z
            rsum = rsum + _recip_refined(z)
        z = z + 1.0                      # z = x + n_shift
        log_prod = jnp.log(prod)
    else:
        z = x
        log_prod = 0.0
        rsum = 0.0
    log_z = jnp.log(z)
    # t only feeds the small Stirling correction terms -> approx is plenty.
    t = pl.reciprocal(z, approx=True)
    t2 = t * t
    lg = ((z - 0.5) * log_z - z + _HALF_LOG_2PI
          + t * (1.0 / 12.0
                 + t2 * (-1.0 / 360.0
                         + t2 * (1.0 / 1260.0 + t2 * (-1.0 / 1680.0))))
          - log_prod)
    dg = (log_z - 0.5 * t
          - t2 * (1.0 / 12.0 + t2 * (-1.0 / 120.0 + t2 * (1.0 / 252.0)))
          - rsum)
    return lg, dg


# ----------------------------------- kernels ---------------------------------------

def _mlp_alpha_stats_kernel(x_ref, w1_ref, b1_ref, w2_ref, b2_ref, w3_ref, b3_ref,
                            alpha_ref, stats_ref, *, constant, alpha_shift, a0_shift):
    # state arrives batch-major [TB, S]; contract the feature axis directly
    # (w1 @ x.T folded into the matmul / idle XLU) -> no wrapper transpose pass.
    x = x_ref[...]                                                       # [TB, S]
    nt = (((1,), (1,)), ((), ()))
    h1 = _leaky_relu(lax.dot_general(w1_ref[...], x, nt,
                                     preferred_element_type=jnp.float32)
                     + b1_ref[...])                                      # [H, TB]
    h2 = _leaky_relu(jnp.dot(w2_ref[...], h1,
                             preferred_element_type=jnp.float32) + b2_ref[...])
    z = jnp.dot(w3_ref[...], h2, preferred_element_type=jnp.float32) + b3_ref[...]
    alpha = _softplus(z) + constant                                      # [A, TB]
    alpha_ref[...] = alpha

    # All alpha-only statistics live here so kernel 2 never recomputes
    # lgamma/digamma and entropy needs no extra alpha HBM readback.
    am1 = alpha - 1.0
    a0 = jnp.sum(alpha, axis=0, keepdims=True)                           # [1, TB]
    lg_alpha, dg_alpha = _lgamma_digamma(alpha, alpha_shift)
    lg_a0, dg_a0 = _lgamma_digamma(a0, a0_shift)
    sum_lg_alpha = jnp.sum(lg_alpha, axis=0, keepdims=True)

    k = float(alpha.shape[0])
    entropy = (sum_lg_alpha - lg_a0 + (a0 - k) * dg_a0
               - jnp.sum(am1 * dg_alpha, axis=0, keepdims=True))         # [1, TB]
    logp_const = lg_a0 - sum_lg_alpha                                    # [1, TB]
    stats_ref[0:1, :] = entropy
    stats_ref[1:2, :] = logp_const


def _dirichlet_sample_kernel(alpha_ref, g_ref, logp_const_ref, actions_ref, logp_ref):
    alpha = alpha_ref[...]                                               # [A, TB]
    g = g_ref[...]                                                       # [A, TB]
    # Clamp guards the (practically impossible with alpha>=1) all-zero column.
    gsum = jnp.maximum(jnp.sum(g, axis=0, keepdims=True), 1e-30)         # [1, TB]
    inv = pl.reciprocal(gsum, approx=False)   # exact: keeps simplex sum to 1e-5
    actions = g * inv
    actions_ref[...] = actions
    # Clamp guards -inf if a gamma draw underflows to exactly 0 in f32.
    log_actions = jnp.log(jnp.maximum(actions, 1e-30))
    logp_ref[...] = (jnp.sum((alpha - 1.0) * log_actions, axis=0, keepdims=True)
                     + logp_const_ref[...])


# --------------------------------- host wrapper -------------------------------------

def init_params(key, state_dim, action_dim, hidden_dim):
    """Xavier-uniform weights (gain=1), zero bias — matches weights_init_.

    Weights are stored PyTorch-style [out, in]; biases [out, 1] so they
    broadcast along the lane (batch) axis inside the kernel.
    """
    dims = [(state_dim, hidden_dim), (hidden_dim, hidden_dim), (hidden_dim, action_dim)]
    params = {}
    keys = jax.random.split(key, len(dims))
    for i, ((fan_in, fan_out), k) in enumerate(zip(dims, keys), start=1):
        limit = math.sqrt(6.0 / (fan_in + fan_out))
        params[f"w{i}"] = jax.random.uniform(
            k, (fan_out, fan_in), jnp.float32, minval=-limit, maxval=limit)
        params[f"b{i}"] = jnp.zeros((fan_out, 1), jnp.float32)
    return params


def _stirling_shift(lower_bound):
    # Recurrence steps needed so z = x + shift >= _STIRLING_MIN_Z given
    # x >= lower_bound.  0 when the bound alone already guarantees it.
    return max(0, min(_MAX_SHIFT, int(math.ceil(_STIRLING_MIN_Z - lower_bound))))


def _pick_tile_b(batch, max_tile=8192, min_split_tile=512):
    """Batch tile.  Per-tile VMEM is KiB–MiB scale, so go big.

    - Small batches: one tile equal to the full batch (block == full dim, so
      the (8,128) rule is satisfied; splitting would just add per-step
      overhead and sub-roofline DMAs).
    - Otherwise: split into >= 2 tiles so dimension_semantics=("parallel",)
      can shard the batch across both v7x TensorCores, keeping tiles >= 512
      (85%+ of HBM roofline) and capping at max_tile (bounds compiler-internal
      VMEM for the elementwise temporaries at ~a few MiB).
    """
    if batch < 2 * min_split_tile:
        return batch
    tile = -(-batch // 2)                      # cdiv(batch, 2)
    tile = ((tile + 127) // 128) * 128         # lane-multiple tiles
    return min(max_tile, tile)


def dirichlet_policy_forward(state, params, key, constant=1.0):
    assert constant > 0.0, "Dirichlet concentration offset must be positive"
    B, S = state.shape
    H = params["w1"].shape[0]
    A = params["w3"].shape[0]

    # alpha = softplus(.) + constant > constant ; a0 = sum(alpha) > A * constant
    alpha_shift = _stirling_shift(constant)
    a0_shift = _stirling_shift(A * constant)

    tile_b = _pick_tile_b(B)
    grid = (pl.cdiv(B, tile_b),)
    cparams = pltpu.CompilerParams(
        dimension_semantics=("parallel",),          # both TensorCores on v7x
        vmem_limit_bytes=32 * 1024 * 1024)          # v5e scoped default is only 16 MiB

    def lane_batch_spec(rows):
        return pl.BlockSpec((rows, tile_b), lambda i: (0, i))

    def const_spec(shape):
        return pl.BlockSpec(shape, lambda i: (0, 0))

    # state stays [B, S] (no wrapper transpose); tiled along the batch rows.
    state_spec = pl.BlockSpec((tile_b, S), lambda i: (i, 0))

    # --- kernel 1: MLP + softplus + constant -> alpha, plus alpha-only stats ---
    alpha_t, stats = pl.pallas_call(
        functools.partial(_mlp_alpha_stats_kernel, constant=constant,
                          alpha_shift=alpha_shift, a0_shift=a0_shift),
        grid=grid,
        in_specs=[state_spec,
                  const_spec((H, S)), const_spec((H, 1)),
                  const_spec((H, H)), const_spec((H, 1)),
                  const_spec((A, H)), const_spec((A, 1))],
        out_specs=(lane_batch_spec(A), lane_batch_spec(2)),
        out_shape=(jax.ShapeDtypeStruct((A, B), jnp.float32),
                   jax.ShapeDtypeStruct((2, B), jnp.float32)),
        compiler_params=cparams,
    )(state, params["w1"], params["b1"], params["w2"], params["b2"],
      params["w3"], params["b3"])

    entropy = stats[0]                                                   # [B]
    logp_const = stats[1:2]                                              # [1, B]

    # TODO(synk): Dirichlet.rsample's Gamma variate generation (rejection
    # sampling) has no clean Pallas equivalent; generated in plain JAX and it
    # likely dominates the end-to-end forward pass.
    g_t = jax.random.gamma(key, alpha_t, dtype=jnp.float32)              # [A, B]

    # --- kernel 2: normalize draws, finish log_prob (bandwidth-bound) ---
    actions_t, logp_t = pl.pallas_call(
        _dirichlet_sample_kernel,
        grid=grid,
        in_specs=[lane_batch_spec(A), lane_batch_spec(A), lane_batch_spec(1)],
        out_specs=(lane_batch_spec(A), lane_batch_spec(1)),
        out_shape=(jax.ShapeDtypeStruct((A, B), jnp.float32),
                   jax.ShapeDtypeStruct((1, B), jnp.float32)),
        compiler_params=cparams,
    )(alpha_t, g_t, logp_const)

    # Match PyTorch return: (actions [B,A], None, log_probs [B,1], entropy [B])
    return actions_t.T, None, logp_t.T, entropy


# ------------------------------------ main ------------------------------------------

if __name__ == "__main__":
    from jax.scipy.special import digamma, gammaln

    def _ref_alpha(s, p, c):
        h1 = jax.nn.leaky_relu(s @ p["w1"].T + p["b1"][:, 0], 0.01)
        h2 = jax.nn.leaky_relu(h1 @ p["w2"].T + p["b2"][:, 0], 0.01)
        z = h2 @ p["w3"].T + p["b3"][:, 0]
        return jax.nn.softplus(z) + c

    def _check(batch, state_dim, action_dim, hidden_dim, seed=0):
        root = jax.random.PRNGKey(seed)
        k_param, k_state, k_sample = jax.random.split(root, 3)

        params = init_params(k_param, state_dim, action_dim, hidden_dim)
        state = jax.random.normal(k_state, (batch, state_dim), jnp.float32)

        fwd = jax.jit(functools.partial(dirichlet_policy_forward, constant=1.0))
        actions, _, log_probs, entropy = fwd(state, params, k_sample)
        jax.block_until_ready((actions, log_probs, entropy))

        assert actions.shape == (batch, action_dim)
        assert log_probs.shape == (batch, 1)
        assert entropy.shape == (batch,)
        # actions are a valid simplex point
        assert bool(jnp.all(jnp.isfinite(actions)))
        assert bool(jnp.allclose(jnp.sum(actions, axis=-1), 1.0, atol=1e-5))
        assert bool(jnp.all(jnp.isfinite(log_probs)))
        assert bool(jnp.all(jnp.isfinite(entropy)))

        # Cross-check log_prob / entropy against jax.scipy special functions,
        # using a plain-JAX recomputation of alpha and kernel-produced actions.
        alpha_ref = _ref_alpha(state, params, 1.0)                       # [B, A]
        a0_ref = jnp.sum(alpha_ref, axis=-1)
        log_beta = jnp.sum(gammaln(alpha_ref), axis=-1) - gammaln(a0_ref)
        logp_ref = jnp.sum((alpha_ref - 1.0) * jnp.log(actions), axis=-1) - log_beta
        ent_ref = (log_beta + (a0_ref - action_dim) * digamma(a0_ref)
                   - jnp.sum((alpha_ref - 1.0) * digamma(alpha_ref), axis=-1))
        assert bool(jnp.allclose(log_probs[:, 0], logp_ref, atol=1e-3, rtol=1e-3))
        assert bool(jnp.allclose(entropy, ent_ref, atol=1e-3, rtol=1e-3))

    # Small shape consistent with the module (hidden scaled down).
    _check(batch=2, state_dim=16, action_dim=8, hidden_dim=32)
    # Tiled path: >= 2 grid steps (v7x megacore) with a ragged last batch tile.
    _check(batch=1100, state_dim=16, action_dim=8, hidden_dim=32)

    print("KERNEL_OK")
</pallas_src>

<mosaic_0001>
module attributes {stable_mosaic.version = 11 : i64} {
  func.func @_mlp_alpha_stats_kernel(%arg0: i32, %arg1: memref<2x16xf32, #tpu.memory_space<vmem>>, %arg2: memref<32x16xf32, #tpu.memory_space<vmem>>, %arg3: memref<32x1xf32, #tpu.memory_space<vmem>>, %arg4: memref<32x32xf32, #tpu.memory_space<vmem>>, %arg5: memref<32x1xf32, #tpu.memory_space<vmem>>, %arg6: memref<8x32xf32, #tpu.memory_space<vmem>>, %arg7: memref<8x1xf32, #tpu.memory_space<vmem>>, %arg8: memref<8x2xf32, #tpu.memory_space<vmem>>, %arg9: memref<2x2xf32, #tpu.memory_space<vmem>>) attributes {dimension_semantics = [#tpu.dimension_semantics<parallel>], iteration_bounds = array<i64: 1>, scalar_prefetch = 0 : i64, scratch_operands = 0 : i64, tpu.core_type = #tpu.core_type<tc>, window_params = [{transform_indices = @transform_0, window_bounds = array<i64: 2, 16>}, {pipeline_mode = #tpu.pipeline_mode<synchronous>, transform_indices = @transform_1, window_bounds = array<i64: 32, 16>}, {pipeline_mode = #tpu.pipeline_mode<synchronous>, transform_indices = @transform_2, window_bounds = array<i64: 32, 1>}, {pipeline_mode = #tpu.pipeline_mode<synchronous>, transform_indices = @transform_3, window_bounds = array<i64: 32, 32>}, {pipeline_mode = #tpu.pipeline_mode<synchronous>, transform_indices = @transform_4, window_bounds = array<i64: 32, 1>}, {pipeline_mode = #tpu.pipeline_mode<synchronous>, transform_indices = @transform_5, window_bounds = array<i64: 8, 32>}, {pipeline_mode = #tpu.pipeline_mode<synchronous>, transform_indices = @transform_6, window_bounds = array<i64: 8, 1>}, {transform_indices = @transform_7, window_bounds = array<i64: 8, 2>}, {transform_indices = @transform_8, window_bounds = array<i64: 2, 2>}]} {
    %c0 = arith.constant 0 : index
    %c0_0 = arith.constant 0 : index
    %0 = vector.load %arg1[%c0, %c0_0] : memref<2x16xf32, #tpu.memory_space<vmem>>, vector<2x16xf32>
    %c0_1 = arith.constant 0 : index
    %c0_2 = arith.constant 0 : index
    %1 = vector.load %arg2[%c0_1, %c0_2] : memref<32x16xf32, #tpu.memory_space<vmem>>, vector<32x16xf32>
    %cst = arith.constant dense<0.000000e+00> : vector<32x2xf32>
    %2 = tpu.matmul %1, %0, %cst {dimension_numbers = #tpu.dot_dimension_numbers<[1], [1], [0], [0], [0, 0, 1, 0], [], []>} : vector<32x16xf32>, vector<2x16xf32>, vector<32x2xf32> -> vector<32x2xf32>
    %c0_3 = arith.constant 0 : index
    %c0_4 = arith.constant 0 : index
    %3 = vector.load %arg3[%c0_3, %c0_4] : memref<32x1xf32, #tpu.memory_space<vmem>>, vector<32x1xf32>
    %4 = vector.broadcast %3 : vector<32x1xf32> to vector<32x2xf32>
    %5 = arith.addf %2, %4 : vector<32x2xf32>
    %cst_5 = arith.constant 0.000000e+00 : f32
    %6 = vector.broadcast %cst_5 : f32 to vector<32x2xf32>
    %7 = arith.cmpf oge, %5, %6 : vector<32x2xf32>
    %cst_6 = arith.constant 0.00999999977 : f32
    %8 = vector.broadcast %cst_6 : f32 to vector<32x2xf32>
    %9 = arith.mulf %8, %5 : vector<32x2xf32>
    %10 = arith.select %7, %5, %9 : vector<32x2xi1>, vector<32x2xf32>
    %c0_7 = arith.constant 0 : index
    %c0_8 = arith.constant 0 : index
    %11 = vector.load %arg4[%c0_7, %c0_8] : memref<32x32xf32, #tpu.memory_space<vmem>>, vector<32x32xf32>
    %cst_9 = arith.constant dense<0.000000e+00> : vector<32x2xf32>
    %12 = tpu.matmul %11, %10, %cst_9 {dimension_numbers = #tpu.dot_dimension_numbers<[1], [0], [0], [1], [0, 0, 1, 1], [], []>} : vector<32x32xf32>, vector<32x2xf32>, vector<32x2xf32> -> vector<32x2xf32>
    %c0_10 = arith.constant 0 : index
    %c0_11 = arith.constant 0 : index
    %13 = vector.load %arg5[%c0_10, %c0_11] : memref<32x1xf32, #tpu.memory_space<vmem>>, vector<32x1xf32>
    %14 = vector.broadcast %13 : vector<32x1xf32> to vector<32x2xf32>
    %15 = arith.addf %12, %14 : vector<32x2xf32>
    %cst_12 = arith.constant 0.000000e+00 : f32
    %16 = vector.broadcast %cst_12 : f32 to vector<32x2xf32>
    %17 = arith.cmpf oge, %15, %16 : vector<32x2xf32>
    %cst_13 = arith.constant 0.00999999977 : f32
    %18 = vector.broadcast %cst_13 : f32 to vector<32x2xf32>
    %19 = arith.mulf %18, %15 : vector<32x2xf32>
    %20 = arith.select %17, %15, %19 : vector<32x2xi1>, vector<32x2xf32>
    %c0_14 = arith.constant 0 : index
    %c0_15 = arith.constant 0 : index
    %21 = vector.load %arg6[%c0_14, %c0_15] : memref<8x32xf32, #tpu.memory_space<vmem>>, vector<8x32xf32>
    %cst_16 = arith.constant dense<0.000000e+00> : vector<8x2xf32>
    %22 = tpu.matmul %21, %20, %cst_16 {dimension_numbers = #tpu.dot_dimension_numbers<[1], [0], [0], [1], [0, 0, 1, 1], [], []>} : vector<8x32xf32>, vector<32x2xf32>, vector<8x2xf32> -> vector<8x2xf32>
    %c0_17 = arith.constant 0 : index
    %c0_18 = arith.constant 0 : index
    %23 = vector.load %arg7[%c0_17, %c0_18] : memref<8x1xf32, #tpu.memory_space<vmem>>, vector<8x1xf32>
    %24 = vector.broadcast %23 : vector<8x1xf32> to vector<8x2xf32>
    %25 = arith.addf %22, %24 : vector<8x2xf32>
    %cst_19 = arith.constant 0.000000e+00 : f32
    %26 = vector.broadcast %cst_19 : f32 to vector<8x2xf32>
    %27 = arith.maximumf %25, %26 : vector<8x2xf32>
    %28 = math.absf %25 : vector<8x2xf32>
    %cst_20 = arith.constant 0.000000e+00 : f32
    %29 = vector.broadcast %cst_20 : f32 to vector<8x2xf32>
    %30 = arith.subf %29, %28 : vector<8x2xf32>
    %31 = math.exp %30 : vector<8x2xf32>
    %32 = math.log1p %31 : vector<8x2xf32>
    %33 = arith.addf %27, %32 : vector<8x2xf32>
    %cst_21 = arith.constant 1.000000e+00 : f32
    %34 = vector.broadcast %cst_21 : f32 to vector<8x2xf32>
    %35 = arith.addf %33, %34 : vector<8x2xf32>
    %c0_22 = arith.constant 0 : index
    %c0_23 = arith.constant 0 : index
    %36 = vector.load %arg8[%c0_22, %c0_23] : memref<8x2xf32, #tpu.memory_space<vmem>>, vector<8x2xf32>
    tpu.vector_store %arg8[%c0_22, %c0_23], %35 {strides = array<i32>} : memref<8x2xf32, #tpu.memory_space<vmem>>, vector<8x2xf32>,
    %cst_24 = arith.constant 1.000000e+00 : f32
    %37 = vector.broadcast %cst_24 : f32 to vector<8x2xf32>
    %38 = arith.subf %35, %37 : vector<8x2xf32>
    %cst_25 = arith.constant dense<0.000000e+00> : vector<2xf32>
    %39 = vector.multi_reduction <add>, %35, %cst_25 [0] : vector<8x2xf32> to vector<2xf32>
    %40 = vector.shape_cast %39 : vector<2xf32> to vector<1x2xf32>
    %41 = tpu.reciprocal %35 {approx = true} : vector<8x2xf32> -> vector<8x2xf32>
    %42 = arith.mulf %35, %41 : vector<8x2xf32>
    %cst_26 = arith.constant 2.000000e+00 : f32
    %43 = vector.broadcast %cst_26 : f32 to vector<8x2xf32>
    %44 = arith.subf %43, %42 : vector<8x2xf32>
    %45 = arith.mulf %41, %44 : vector<8x2xf32>
    %cst_27 = arith.constant 1.000000e+00 : f32
    %46 = vector.broadcast %cst_27 : f32 to vector<8x2xf32>
    %47 = arith.addf %35, %46 : vector<8x2xf32>
    %48 = arith.mulf %35, %47 : vector<8x2xf32>
    %49 = tpu.reciprocal %47 {approx = true} : vector<8x2xf32> -> vector<8x2xf32>
    %50 = arith.mulf %47, %49 : vector<8x2xf32>
    %cst_28 = arith.constant 2.000000e+00 : f32
    %51 = vector.broadcast %cst_28 : f32 to vector<8x2xf32>
    %52 = arith.subf %51, %50 : vector<8x2xf32>
    %53 = arith.mulf %49, %52 : vector<8x2xf32>
    %54 = arith.addf %45, %53 : vector<8x2xf32>
    %cst_29 = arith.constant 1.000000e+00 : f32
    %55 = vector.broadcast %cst_29 : f32 to vector<8x2xf32>
    %56 = arith.addf %47, %55 : vector<8x2xf32>
    %57 = arith.mulf %48, %56 : vector<8x2xf32>
    %58 = tpu.reciprocal %56 {approx = true} : vector<8x2xf32> -> vector<8x2xf32>
    %59 = arith.mulf %56, %58 : vector<8x2xf32>
    %cst_30 = arith.constant 2.000000e+00 : f32
    %60 = vector.broadcast %cst_30 : f32 to vector<8x2xf32>
    %61 = arith.subf %60, %59 : vector<8x2xf32>
    %62 = arith.mulf %58, %61 : vector<8x2xf32>
    %63 = arith.addf %54, %62 : vector<8x2xf32>
    %cst_31 = arith.constant 1.000000e+00 : f32
    %64 = vector.broadcast %cst_31 : f32 to vector<8x2xf32>
    %65 = arith.addf %56, %64 : vector<8x2xf32>
    %66 = arith.mulf %57, %65 : vector<8x2xf32>
    %67 = tpu.reciprocal %65 {approx = true} : vector<8x2xf32> -> vector<8x2xf32>
    %68 = arith.mulf %65, %67 : vector<8x2xf32>
    %cst_32 = arith.constant 2.000000e+00 : f32
    %69 = vector.broadcast %cst_32 : f32 to vector<8x2xf32>
    %70 = arith.subf %69, %68 : vector<8x2xf32>
    %71 = arith.mulf %67, %70 : vector<8x2xf32>
    %72 = arith.addf %63, %71 : vector<8x2xf32>
    %cst_33 = arith.constant 1.000000e+00 : f32
    %73 = vector.broadcast %cst_33 : f32 to vector<8x2xf32>
    %74 = arith.addf %65, %73 : vector<8x2xf32>
    %75 = math.log %66 : vector<8x2xf32>
    %76 = math.log %74 : vector<8x2xf32>
    %77 = tpu.reciprocal %74 {approx = true} : vector<8x2xf32> -> vector<8x2xf32>
    %78 = arith.mulf %77, %77 : vector<8x2xf32>
    %cst_34 = arith.constant 5.000000e-01 : f32
    %79 = vector.broadcast %cst_34 : f32 to vector<8x2xf32>
    %80 = arith.subf %74, %79 : vector<8x2xf32>
    %81 = arith.mulf %80, %76 : vector<8x2xf32>
    %82 = arith.subf %81, %74 : vector<8x2xf32>
    %cst_35 = arith.constant 0.918938517 : f32
    %83 = vector.broadcast %cst_35 : f32 to vector<8x2xf32>
    %84 = arith.addf %82, %83 : vector<8x2xf32>
    %cst_36 = arith.constant -5.95238118E-4 : f32
    %85 = vector.broadcast %cst_36 : f32 to vector<8x2xf32>
    %86 = arith.mulf %78, %85 : vector<8x2xf32>
    %cst_37 = arith.constant 7.93650805E-4 : f32
    %87 = vector.broadcast %cst_37 : f32 to vector<8x2xf32>
    %88 = arith.addf %87, %86 : vector<8x2xf32>
    %89 = arith.mulf %78, %88 : vector<8x2xf32>
    %cst_38 = arith.constant -0.00277777785 : f32
    %90 = vector.broadcast %cst_38 : f32 to vector<8x2xf32>
    %91 = arith.addf %90, %89 : vector<8x2xf32>
    %92 = arith.mulf %78, %91 : vector<8x2xf32>
    %cst_39 = arith.constant 0.0833333358 : f32
    %93 = vector.broadcast %cst_39 : f32 to vector<8x2xf32>
    %94 = arith.addf %93, %92 : vector<8x2xf32>
    %95 = arith.mulf %77, %94 : vector<8x2xf32>
    %96 = arith.addf %84, %95 : vector<8x2xf32>
    %97 = arith.subf %96, %75 : vector<8x2xf32>
    %cst_40 = arith.constant 5.000000e-01 : f32
    %98 = vector.broadcast %cst_40 : f32 to vector<8x2xf32>
    %99 = arith.mulf %98, %77 : vector<8x2xf32>
    %100 = arith.subf %76, %99 : vector<8x2xf32>
    %cst_41 = arith.constant 0.0039682542 : f32
    %101 = vector.broadcast %cst_41 : f32 to vector<8x2xf32>
    %102 = arith.mulf %78, %101 : vector<8x2xf32>
    %cst_42 = arith.constant -0.00833333377 : f32
    %103 = vector.broadcast %cst_42 : f32 to vector<8x2xf32>
    %104 = arith.addf %103, %102 : vector<8x2xf32>
    %105 = arith.mulf %78, %104 : vector<8x2xf32>
    %cst_43 = arith.constant 0.0833333358 : f32
    %106 = vector.broadcast %cst_43 : f32 to vector<8x2xf32>
    %107 = arith.addf %106, %105 : vector<8x2xf32>
    %108 = arith.mulf %78, %107 : vector<8x2xf32>
    %109 = arith.subf %100, %108 : vector<8x2xf32>
    %110 = arith.subf %109, %72 : vector<8x2xf32>
    %111 = math.log %40 : vector<1x2xf32>
    %112 = tpu.reciprocal %40 {approx = true} : vector<1x2xf32> -> vector<1x2xf32>
    %113 = arith.mulf %112, %112 : vector<1x2xf32>
    %cst_44 = arith.constant 5.000000e-01 : f32
    %114 = vector.broadcast %cst_44 : f32 to vector<1x2xf32>
    %115 = arith.subf %40, %114 : vector<1x2xf32>
    %116 = arith.mulf %115, %111 : vector<1x2xf32>
    %117 = arith.subf %116, %40 : vector<1x2xf32>
    %cst_45 = arith.constant 0.918938517 : f32
    %118 = vector.broadcast %cst_45 : f32 to vector<1x2xf32>
    %119 = arith.addf %117, %118 : vector<1x2xf32>
    %cst_46 = arith.constant -5.95238118E-4 : f32
    %120 = vector.broadcast %cst_46 : f32 to vector<1x2xf32>
    %121 = arith.mulf %113, %120 : vector<1x2xf32>
    %cst_47 = arith.constant 7.93650805E-4 : f32
    %122 = vector.broadcast %cst_47 : f32 to vector<1x2xf32>
    %123 = arith.addf %122, %121 : vector<1x2xf32>
    %124 = arith.mulf %113, %123 : vector<1x2xf32>
    %cst_48 = arith.constant -0.00277777785 : f32
    %125 = vector.broadcast %cst_48 : f32 to vector<1x2xf32>
    %126 = arith.addf %125, %124 : vector<1x2xf32>
    %127 = arith.mulf %113, %126 : vector<1x2xf32>
    %cst_49 = arith.constant 0.0833333358 : f32
    %128 = vector.broadcast %cst_49 : f32 to vector<1x2xf32>
    %129 = arith.addf %128, %127 : vector<1x2xf32>
    %130 = arith.mulf %112, %129 : vector<1x2xf32>
    %131 = arith.addf %119, %130 : vector<1x2xf32>
    %cst_50 = arith.constant 0.000000e+00 : f32
    %132 = vector.broadcast %cst_50 : f32 to vector<1x2xf32>
    %133 = arith.subf %131, %132 : vector<1x2xf32>
    %cst_51 = arith.constant 5.000000e-01 : f32
    %134 = vector.broadcast %cst_51 : f32 to vector<1x2xf32>
    %135 = arith.mulf %134, %112 : vector<1x2xf32>
    %136 = arith.subf %111, %135 : vector<1x2xf32>
    %cst_52 = arith.constant 0.0039682542 : f32
    %137 = vector.broadcast %cst_52 : f32 to vector<1x2xf32>
    %138 = arith.mulf %113, %137 : vector<1x2xf32>
    %cst_53 = arith.constant -0.00833333377 : f32
    %139 = vector.broadcast %cst_53 : f32 to vector<1x2xf32>
    %140 = arith.addf %139, %138 : vector<1x2xf32>
    %141 = arith.mulf %113, %140 : vector<1x2xf32>
    %cst_54 = arith.constant 0.0833333358 : f32
    %142 = vector.broadcast %cst_54 : f32 to vector<1x2xf32>
    %143 = arith.addf %142, %141 : vector<1x2xf32>
    %144 = arith.mulf %113, %143 : vector<1x2xf32>
    %145 = arith.subf %136, %144 : vector<1x2xf32>
    %cst_55 = arith.constant 0.000000e+00 : f32
    %146 = vector.broadcast %cst_55 : f32 to vector<1x2xf32>
    %147 = arith.subf %145, %146 : vector<1x2xf32>
    %cst_56 = arith.constant dense<0.000000e+00> : vector<2xf32>
    %148 = vector.multi_reduction <add>, %97, %cst_56 [0] : vector<8x2xf32> to vector<2xf32>
    %149 = vector.shape_cast %148 : vector<2xf32> to vector<1x2xf32>
    %150 = arith.subf %149, %133 : vector<1x2xf32>
    %cst_57 = arith.constant 8.000000e+00 : f32
    %151 = vector.broadcast %cst_57 : f32 to vector<1x2xf32>
    %152 = arith.subf %40, %151 : vector<1x2xf32>
    %153 = arith.mulf %152, %147 : vector<1x2xf32>
    %154 = arith.addf %150, %153 : vector<1x2xf32>
    %155 = arith.mulf %38, %110 : vector<8x2xf32>
    %cst_58 = arith.constant dense<0.000000e+00> : vector<2xf32>
    %156 = vector.multi_reduction <add>, %155, %cst_58 [0] : vector<8x2xf32> to vector<2xf32>
    %157 = vector.shape_cast %156 : vector<2xf32> to vector<1x2xf32>
    %158 = arith.subf %154, %157 : vector<1x2xf32>
    %159 = arith.subf %133, %149 : vector<1x2xf32>
    %c0_59 = arith.constant 0 : index
    %c0_60 = arith.constant 0 : index
    %160 = vector.load %arg9[%c0_59, %c0_60] : memref<2x2xf32, #tpu.memory_space<vmem>>, vector<1x2xf32>
    tpu.vector_store %arg9[%c0_59, %c0_60], %158 {strides = array<i32>} : memref<2x2xf32, #tpu.memory_space<vmem>>, vector<1x2xf32>,
    %c1 = arith.constant 1 : index
    %c0_61 = arith.constant 0 : index
    %161 = vector.load %arg9[%c1, %c0_61] : memref<2x2xf32, #tpu.memory_space<vmem>>, vector<1x2xf32>
    tpu.vector_store %arg9[%c1, %c0_61], %159 {strides = array<i32>} : memref<2x2xf32, #tpu.memory_space<vmem>>, vector<1x2xf32>,
    return
  }
  func.func @transform_0(%arg0: i32) -> (i32, i32) {
    %c0_i32 = arith.constant 0 : i32
    %c0_i32_0 = arith.constant 0 : i32
    return %arg0, %c0_i32 : i32, i32
  }
  func.func @transform_1(%arg0: i32) -> (i32, i32) {
    %c0_i32 = arith.constant 0 : i32
    %c0_i32_0 = arith.constant 0 : i32
    %c0_i32_1 = arith.constant 0 : i32
    return %c0_i32, %c0_i32_0 : i32, i32
  }
  func.func @transform_2(%arg0: i32) -> (i32, i32) {
    %c0_i32 = arith.constant 0 : i32
    %c0_i32_0 = arith.constant 0 : i32
    %c0_i32_1 = arith.constant 0 : i32
    return %c0_i32, %c0_i32_0 : i32, i32
  }
  func.func @transform_3(%arg0: i32) -> (i32, i32) {
    %c0_i32 = arith.constant 0 : i32
    %c0_i32_0 = arith.constant 0 : i32
    %c0_i32_1 = arith.constant 0 : i32
    return %c0_i32, %c0_i32_0 : i32, i32
  }
  func.func @transform_4(%arg0: i32) -> (i32, i32) {
    %c0_i32 = arith.constant 0 : i32
    %c0_i32_0 = arith.constant 0 : i32
    %c0_i32_1 = arith.constant 0 : i32
    return %c0_i32, %c0_i32_0 : i32, i32
  }
  func.func @transform_5(%arg0: i32) -> (i32, i32) {
    %c0_i32 = arith.constant 0 : i32
    %c0_i32_0 = arith.constant 0 : i32
    %c0_i32_1 = arith.constant 0 : i32
    return %c0_i32, %c0_i32_0 : i32, i32
  }
  func.func @transform_6(%arg0: i32) -> (i32, i32) {
    %c0_i32 = arith.constant 0 : i32
    %c0_i32_0 = arith.constant 0 : i32
    %c0_i32_1 = arith.constant 0 : i32
    return %c0_i32, %c0_i32_0 : i32, i32
  }
  func.func @transform_7(%arg0: i32) -> (i32, i32) {
    %c0_i32 = arith.constant 0 : i32
    %c0_i32_0 = arith.constant 0 : i32
    return %c0_i32, %arg0 : i32, i32
  }
  func.func @transform_8(%arg0: i32) -> (i32, i32) {
    %c0_i32 = arith.constant 0 : i32
    %c0_i32_0 = arith.constant 0 : i32
    return %c0_i32, %arg0 : i32, i32
  }
}

module attributes {stable_mosaic.version = 11 : i64} {
  func.func @_dirichlet_sample_kernel(%arg0: i32, %arg1: memref<8x2xf32, #tpu.memory_space<vmem>>, %arg2: memref<8x2xf32, #tpu.memory_space<vmem>>, %arg3: memref<1x2xf32, #tpu.memory_space<vmem>>, %arg4: memref<8x2xf32, #tpu.memory_space<vmem>>, %arg5: memref<1x2xf32, #tpu.memory_space<vmem>>) attributes {dimension_semantics = [#tpu.dimension_semantics<parallel>], iteration_bounds = array<i64: 1>, scalar_prefetch = 0 : i64, scratch_operands = 0 : i64, tpu.core_type = #tpu.core_type<tc>, window_params = [{transform_indices = @transform_0, window_bounds = array<i64: 8, 2>}, {transform_indices = @transform_1, window_bounds = array<i64: 8, 2>}, {transform_indices = @transform_2, window_bounds = array<i64: 1, 2>}, {transform_indices = @transform_3, window_bounds = array<i64: 8, 2>}, {transform_indices = @transform_4, window_bounds = array<i64: 1, 2>}]} {
    %c0 = arith.constant 0 : index
    %c0_0 = arith.constant 0 : index
    %0 = vector.load %arg1[%c0, %c0_0] : memref<8x2xf32, #tpu.memory_space<vmem>>, vector<8x2xf32>
    %c0_1 = arith.constant 0 : index
    %c0_2 = arith.constant 0 : index
    %1 = vector.load %arg2[%c0_1, %c0_2] : memref<8x2xf32, #tpu.memory_space<vmem>>, vector<8x2xf32>
    %cst = arith.constant dense<0.000000e+00> : vector<2xf32>
    %2 = vector.multi_reduction <add>, %1, %cst [0] : vector<8x2xf32> to vector<2xf32>
    %3 = vector.shape_cast %2 : vector<2xf32> to vector<1x2xf32>
    %cst_3 = arith.constant 1.000000e-30 : f32
    %4 = vector.broadcast %cst_3 : f32 to vector<1x2xf32>
    %5 = arith.maximumf %3, %4 : vector<1x2xf32>
    %6 = tpu.reciprocal %5 : vector<1x2xf32> -> vector<1x2xf32>
    %7 = vector.broadcast %6 : vector<1x2xf32> to vector<8x2xf32>
    %8 = arith.mulf %1, %7 : vector<8x2xf32>
    %c0_4 = arith.constant 0 : index
    %c0_5 = arith.constant 0 : index
    %9 = vector.load %arg4[%c0_4, %c0_5] : memref<8x2xf32, #tpu.memory_space<vmem>>, vector<8x2xf32>
    tpu.vector_store %arg4[%c0_4, %c0_5], %8 {strides = array<i32>} : memref<8x2xf32, #tpu.memory_space<vmem>>, vector<8x2xf32>,
    %cst_6 = arith.constant 1.000000e-30 : f32
    %10 = vector.broadcast %cst_6 : f32 to vector<8x2xf32>
    %11 = arith.maximumf %8, %10 : vector<8x2xf32>
    %12 = math.log %11 : vector<8x2xf32>
    %cst_7 = arith.constant 1.000000e+00 : f32
    %13 = vector.broadcast %cst_7 : f32 to vector<8x2xf32>
    %14 = arith.subf %0, %13 : vector<8x2xf32>
    %15 = arith.mulf %14, %12 : vector<8x2xf32>
    %cst_8 = arith.constant dense<0.000000e+00> : vector<2xf32>
    %16 = vector.multi_reduction <add>, %15, %cst_8 [0] : vector<8x2xf32> to vector<2xf32>
    %17 = vector.shape_cast %16 : vector<2xf32> to vector<1x2xf32>
    %c0_9 = arith.constant 0 : index
    %c0_10 = arith.constant 0 : index
    %18 = vector.load %arg3[%c0_9, %c0_10] : memref<1x2xf32, #tpu.memory_space<vmem>>, vector<1x2xf32>
    %19 = arith.addf %17, %18 : vector<1x2xf32>
    %c0_11 = arith.constant 0 : index
    %c0_12 = arith.constant 0 : index
    %20 = vector.load %arg5[%c0_11, %c0_12] : memref<1x2xf32, #tpu.memory_space<vmem>>, vector<1x2xf32>
    tpu.vector_store %arg5[%c0_11, %c0_12], %19 {strides = array<i32>} : memref<1x2xf32, #tpu.memory_space<vmem>>, vector<1x2xf32>,
    return
  }
  func.func @transform_0(%arg0: i32) -> (i32, i32) {
    %c0_i32 = arith.constant 0 : i32
    %c0_i32_0 = arith.constant 0 : i32
    return %c0_i32, %arg0 : i32, i32
  }
  func.func @transform_1(%arg0: i32) -> (i32, i32) {
    %c0_i32 = arith.constant 0 : i32
    %c0_i32_0 = arith.constant 0 : i32
    return %c0_i32, %arg0 : i32, i32
  }
  func.func @transform_2(%arg0: i32) -> (i32, i32) {
    %c0_i32 = arith.constant 0 : i32
    %c0_i32_0 = arith.constant 0 : i32
    return %c0_i32, %arg0 : i32, i32
  }
  func.func @transform_3(%arg0: i32) -> (i32, i32) {
    %c0_i32 = arith.constant 0 : i32
    %c0_i32_0 = arith.constant 0 : i32
    return %c0_i32, %arg0 : i32, i32
  }
  func.func @transform_4(%arg0: i32) -> (i32, i32) {
    %c0_i32 = arith.constant 0 : i32
    %c0_i32_0 = arith.constant 0 : i32
    return %c0_i32, %arg0 : i32, i32
  }
}

</mosaic_0001>

<llo_original>
// kernel: dirichlet_policy_forward.2
$region0: #{dirichlet_policy_forward.2}
  #allocation0 [shape = 'u32[]', space=smem, size = 0x4, offset = 0x4, fixed_abs, tag = 'smem constant byte address 0x4 - core index']
  #allocation1 [shape = 'u32[144,128]{1,0:T(1,128)}', space=vmem, size = 0x12000, scoped, tag = 'internal scratch']
  %s0 = inlined_call_operand.vmem [shape: f32[2,16], index: 0, kind: input, shape index: {}]
  %s1 = inlined_call_operand.vmem [shape: f32[32,16], index: 1, kind: input, shape index: {}]
  %s2 = inlined_call_operand.vmem [shape: f32[32,1], index: 2, kind: input, shape index: {}]
  %s3 = inlined_call_operand.vmem [shape: f32[32,32], index: 3, kind: input, shape index: {}]
  %s4 = inlined_call_operand.vmem [shape: f32[32,1], index: 4, kind: input, shape index: {}]
  %s5 = inlined_call_operand.vmem [shape: f32[8,32], index: 5, kind: input, shape index: {}]
  %s6 = inlined_call_operand.vmem [shape: f32[8,1], index: 6, kind: input, shape index: {}]
  %s7 = inlined_call_operand.vmem [shape: f32[8,2], index: 7, kind: output, shape index: {0}]
  %s8 = inlined_call_operand.vmem [shape: f32[2,2], index: 8, kind: output, shape index: {1}]
  %9 = xla_tuple %s7, %s8
  %s10 = sld [smem:[#allocation0]]
  $region46: #{dirichlet_policy_forward.2} parent=0
    _
  %s12 = ssub.s32 1, %s10
  %s13 = scalar_select 0, %s12, %s10
  // Predicated region
  $region2: #{dirichlet_policy_forward.2} parent=0 // pred_check
    _
  $region3: #{dirichlet_policy_forward.2} parent=0 // pred_check_branch
    %15 = sbr.rel (0) target = $region5
  $region4: #{dirichlet_policy_forward.2} parent=0 // pred_region
    _
  $region5: #{dirichlet_policy_forward.2} parent=0 // pred_fallthru
    _
  // Predicated region
  $region6: #{dirichlet_policy_forward.2} parent=0 // pred_check
    _
  $region7: #{dirichlet_policy_forward.2} parent=0 // pred_check_branch
    %17 = sbr.rel (0) target = $region9
  $region8: #{dirichlet_policy_forward.2} parent=0 // pred_region
    _
  $region9: #{dirichlet_policy_forward.2} parent=0 // pred_fallthru
    _
  // Predicated region
  $region10: #{dirichlet_policy_forward.2} parent=0 // pred_check
    _
  $region11: #{dirichlet_policy_forward.2} parent=0 // pred_check_branch
    %19 = sbr.rel (0) target = $region13
  $region12: #{dirichlet_policy_forward.2} parent=0 // pred_region
    _
  $region13: #{dirichlet_policy_forward.2} parent=0 // pred_fallthru
    _
  // Predicated region
  $region14: #{dirichlet_policy_forward.2} parent=0 // pred_check
    _
  $region15: #{dirichlet_policy_forward.2} parent=0 // pred_check_branch
    %21 = sbr.rel (0) target = $region17
  $region16: #{dirichlet_policy_forward.2} parent=0 // pred_region
    _
  $region17: #{dirichlet_policy_forward.2} parent=0 // pred_fallthru
    _
  // Predicated region
  $region18: #{dirichlet_policy_forward.2} parent=0 // pred_check
    _
  $region19: #{dirichlet_policy_forward.2} parent=0 // pred_check_branch
    %23 = sbr.rel (0) target = $region21
  $region20: #{dirichlet_policy_forward.2} parent=0 // pred_region
    _
  $region21: #{dirichlet_policy_forward.2} parent=0 // pred_fallthru
    _
  // Predicated region
  $region22: #{dirichlet_policy_forward.2} parent=0 // pred_check
    _
  $region23: #{dirichlet_policy_forward.2} parent=0 // pred_check_branch
    %25 = sbr.rel (0) target = $region25
  $region24: #{dirichlet_policy_forward.2} parent=0 // pred_region
    _
  $region25: #{dirichlet_policy_forward.2} parent=0 // pred_fallthru
    _
  // Predicated region
  $region26: #{dirichlet_policy_forward.2} parent=0 // pred_check
    _
  $region27: #{dirichlet_policy_forward.2} parent=0 // pred_check_branch
    %27 = sbr.rel (0) target = $region29
  $region28: #{dirichlet_policy_forward.2} parent=0 // pred_region
    _
  $region29: #{dirichlet_policy_forward.2} parent=0 // pred_fallthru
    _
  %v28 = vld [vmem:[%s0] sm:$0x3]
  %v29 = vld [vmem:[%s1] sm:$0xff]
  %v30 = vld [vmem:[%s1 + $0x8] sm:$0xff]
  %v31 = vld [vmem:[%s1 + $0x10] sm:$0xff]
  %v32 = vld [vmem:[%s1 + $0x18] sm:$0xff]
  %v33 = vld [vmem:[%s2] sm:$0xff]
  %v34 = vld [vmem:[%s2 + $0x8] sm:$0xff]
  %v35 = vld [vmem:[%s2 + $0x10] sm:$0xff]
  %v36 = vld [vmem:[%s2 + $0x18] sm:$0xff]
  %38 = vset.pattern.permute.xlu0 0
  %39 = vperm.xlu0 %38, %v33
  %v40 = vpop.permute.xlu0 %39
  %43 = vset.pattern.permute.xlu0 0
  %44 = vperm.xlu0 %43, %v34
  %v45 = vpop.permute.xlu0 %44
  %48 = vset.pattern.permute.xlu0 0
  %49 = vperm.xlu0 %48, %v35
  %v50 = vpop.permute.xlu0 %49
  %53 = vset.pattern.permute.xlu0 0
  %54 = vperm.xlu0 %53, %v36
  %v55 = vpop.permute.xlu0 %54
  %vm57 = vcmask 130048
  %v59 = vsel %vm57, %v29, 0
  %v62 = vsel %vm57, %v30, 0
  %v65 = vsel %vm57, %v31, 0
  %v68 = vsel %vm57, %v32, 0
  %v71 = vsel %vm57, %v28, 0
  %73 = vmatprep.subr.mxu0 0.0
  %74 = vmatpush1.xpose.msra.mxu0 0.0
  %75 = vmatprep.subr.mxu0 0.0
  %76 = vmatpush1.xpose.msra.mxu0 0.0
  %77 = vmatprep.subr.mxu0 0.0
  %78 = vmatpush1.xpose.msra.mxu0 0.0
  %79 = vmatprep.subr.mxu0 0.0
  %80 = vmatpush1.xpose.msra.mxu0 0.0
  %81 = vmatprep.subr.mxu0 0.0
  %82 = vmatpush1.xpose.msra.mxu0 0.0
  %83 = vmatprep.subr.mxu0 0.0
  %84 = vmatpush1.xpose.msra.mxu0 0.0
  %85 = vmatprep.subr.mxu0 0.0
  %86 = vmatpush1.xpose.msra.mxu0 0.0
  %87 = vmatprep.subr.mxu0 0.0
  %88 = vmatpush1.xpose.msra.mxu0 0.0
  %89 = vmatprep.subr.mxu0 0.0
  %90 = vmatpush1.xpose.msra.mxu0 0.0
  %91 = vmatprep.subr.mxu0 0.0
  %92 = vmatpush1.xpose.msra.mxu0 0.0
  %93 = vmatprep.subr.mxu0 0.0
  %94 = vmatpush1.xpose.msra.mxu0 0.0
  %95 = vmatprep.subr.mxu0 0.0
  %96 = vmatpush1.xpose.msra.mxu0 0.0
  %97 = vmatprep.subr.mxu0 0.0
  %98 = vmatpush1.xpose.msra.mxu0 0.0
  %99 = vmatprep.subr.mxu0 0.0
  %100 = vmatpush1.xpose.msra.mxu0 0.0
  %101 = vmatprep.subr.mxu0 0.0
  %102 = vmatpush1.xpose.msra.mxu0 0.0
  %103 = vmatprep.subr.mxu0 0.0
  %104 = vmatpush1.xpose.msra.mxu0 %v71
  %105 = vmatprep.subr.mxu0 0.0
  %106 = vmatpush2.xpose.msra.mxu0 0.0
  %107 = vmatprep.subr.mxu0 0.0
  %108 = vmatpush2.xpose.msra.mxu0 0.0
  %109 = vmatprep.subr.mxu0 0.0
  %110 = vmatpush2.xpose.msra.mxu0 0.0
  %111 = vmatprep.subr.mxu0 0.0
  %112 = vmatpush2.xpose.msra.mxu0 0.0
  %113 = vmatprep.subr.mxu0 0.0
  %114 = vmatpush2.xpose.msra.mxu0 0.0
  %115 = vmatprep.subr.mxu0 0.0
  %116 = vmatpush2.xpose.msra.mxu0 0.0
  %117 = vmatprep.subr.mxu0 0.0
  %118 = vmatpush2.xpose.msra.mxu0 0.0
  %119 = vmatprep.subr.mxu0 0.0
  %120 = vmatpush2.xpose.msra.mxu0 0.0
  %121 = vmatprep.subr.mxu0 0.0
  %122 = vmatpush2.xpose.msra.mxu0 0.0
  %123 = vmatprep.subr.mxu0 0.0
  %124 = vmatpush2.xpose.msra.mxu0 0.0
  %125 = vmatprep.subr.mxu0 0.0
  %126 = vmatpush2.xpose.msra.mxu0 0.0
  %127 = vmatprep.subr.mxu0 0.0
  %128 = vmatpush2.xpose.msra.mxu0 0.0
  %129 = vmatprep.subr.mxu0 0.0
  %130 = vmatpush2.xpose.msra.mxu0 0.0
  %131 = vmatprep.subr.mxu0 0.0
  %132 = vmatpush2.xpose.msra.mxu0 0.0
  %133 = vmatprep.subr.mxu0 0.0
  %134 = vmatpush2.xpose.msra.mxu0 0.0
  %135 = vmatprep.subr.mxu0 0.0
  %136 = vmatpush2.xpose.msra.mxu0 0.0
  %137 = vmatprep.mubr.f32.mxu0 0.0
  %138 = vmatmul.mubr.f32.gmra.mxu0 %v59
  %v139 = vpop.f32.mrf.mxu0
  %v140 = vadd.f32 %v40, %v139
  %v141 = vpop.f32.mrf.mxu0
  %142 = vmatprep.mubr.f32.mxu0 0.0
  %143 = vmatmul.mubr.f32.gmra.mxu0 %v62
  %v144 = vpop.f32.mrf.mxu0
  %v145 = vadd.f32 %v45, %v144
  %v146 = vpop.f32.mrf.mxu0
  %147 = vmatprep.mubr.f32.mxu0 0.0
  %148 = vmatmul.mubr.f32.gmra.mxu0 %v65
  %v149 = vpop.f32.mrf.mxu0
  %v150 = vadd.f32 %v50, %v149
  %v151 = vpop.f32.mrf.mxu0
  %152 = vmatprep.mubr.f32.mxu0 0.0
  %153 = vmatmul.mubr.f32.gmra.mxu0 %v68
  %v154 = vpop.f32.mrf.mxu0
  %v155 = vadd.f32 %v55, %v154
  %v156 = vpop.f32.mrf.mxu0
  %157 = vdwg.mxu0
  %vm158 = vcmp.ge.f32.partialorder %v140, 0.0
  %vm159 = vcmp.ge.f32.partialorder %v145, 0.0
  %vm160 = vcmp.ge.f32.partialorder %v150, 0.0
  %vm161 = vcmp.ge.f32.partialorder %v155, 0.0
  %v162 = vmul.f32 %v140, 0.01
  %v163 = vmul.f32 %v145, 0.01
  %v164 = vmul.f32 %v150, 0.01
  %v165 = vmul.f32 %v155, 0.01
  %v166 = vsel %vm158, %v140, %v162
  %v167 = vsel %vm159, %v145, %v163
  %v168 = vsel %vm160, %v150, %v164
  %v169 = vsel %vm161, %v155, %v165
  %v170 = vld [vmem:[%s3] sm:$0xff]
  %v171 = vld [vmem:[%s3 + $0x8] sm:$0xff]
  %v172 = vld [vmem:[%s3 + $0x10] sm:$0xff]
  %v173 = vld [vmem:[%s3 + $0x18] sm:$0xff]
  %v174 = vld [vmem:[%s4] sm:$0xff]
  %v175 = vld [vmem:[%s4 + $0x8] sm:$0xff]
  %v176 = vld [vmem:[%s4 + $0x10] sm:$0xff]
  %v177 = vld [vmem:[%s4 + $0x18] sm:$0xff]
  %179 = vset.pattern.permute.xlu0 0
  %180 = vperm.xlu0 %179, %v174
  %v181 = vpop.permute.xlu0 %180
  %184 = vset.pattern.permute.xlu0 0
  %185 = vperm.xlu0 %184, %v175
  %v186 = vpop.permute.xlu0 %185
  %189 = vset.pattern.permute.xlu0 0
  %190 = vperm.xlu0 %189, %v176
  %v191 = vpop.permute.xlu0 %190
  %194 = vset.pattern.permute.xlu0 0
  %195 = vperm.xlu0 %194, %v177
  %v196 = vpop.permute.xlu0 %195
  %vm198 = vcmask 261120
  %v200 = vsel %vm198, %v170, 0
  %v203 = vsel %vm198, %v171, 0
  %v206 = vsel %vm198, %v172, 0
  %v209 = vsel %vm198, %v173, 0
  %211 = vmatprep.subr.mxu0 0.0
  %212 = vmatpush1.msra.mxu0 0.0
  %213 = vmatprep.subr.mxu0 0.0
  %214 = vmatpush1.msra.mxu0 0.0
  %215 = vmatprep.subr.mxu0 0.0
  %216 = vmatpush1.msra.mxu0 0.0
  %217 = vmatprep.subr.mxu0 0.0
  %218 = vmatpush1.msra.mxu0 0.0
  %219 = vmatprep.subr.mxu0 0.0
  %220 = vmatpush1.msra.mxu0 0.0
  %221 = vmatprep.subr.mxu0 0.0
  %222 = vmatpush1.msra.mxu0 0.0
  %223 = vmatprep.subr.mxu0 0.0
  %224 = vmatpush1.msra.mxu0 0.0
  %225 = vmatprep.subr.mxu0 0.0
  %226 = vmatpush1.msra.mxu0 0.0
  %227 = vmatprep.subr.mxu0 0.0
  %228 = vmatpush1.msra.mxu0 0.0
  %229 = vmatprep.subr.mxu0 0.0
  %230 = vmatpush1.msra.mxu0 0.0
  %231 = vmatprep.subr.mxu0 0.0
  %232 = vmatpush1.msra.mxu0 0.0
  %233 = vmatprep.subr.mxu0 0.0
  %234 = vmatpush1.msra.mxu0 0.0
  %235 = vmatprep.subr.mxu0 0.0
  %236 = vmatpush1.msra.mxu0 %v169
  %237 = vmatprep.subr.mxu0 0.0
  %238 = vmatpush1.msra.mxu0 %v168
  %239 = vmatprep.subr.mxu0 0.0
  %240 = vmatpush1.msra.mxu0 %v167
  %241 = vmatprep.subr.mxu0 0.0
  %242 = vmatpush1.msra.mxu0 %v166
  %243 = vmatprep.subr.mxu0 0.0
  %244 = vmatpush2.msra.mxu0 0.0
  %245 = vmatprep.subr.mxu0 0.0
  %246 = vmatpush2.msra.mxu0 0.0
  %247 = vmatprep.subr.mxu0 0.0
  %248 = vmatpush2.msra.mxu0 0.0
  %249 = vmatprep.subr.mxu0 0.0
  %250 = vmatpush2.msra.mxu0 0.0
  %251 = vmatprep.subr.mxu0 0.0
  %252 = vmatpush2.msra.mxu0 0.0
  %253 = vmatprep.subr.mxu0 0.0
  %254 = vmatpush2.msra.mxu0 0.0
  %255 = vmatprep.subr.mxu0 0.0
  %256 = vmatpush2.msra.mxu0 0.0
  %257 = vmatprep.subr.mxu0 0.0
  %258 = vmatpush2.msra.mxu0 0.0
  %259 = vmatprep.subr.mxu0 0.0
  %260 = vmatpush2.msra.mxu0 0.0
  %261 = vmatprep.subr.mxu0 0.0
  %262 = vmatpush2.msra.mxu0 0.0
  %263 = vmatprep.subr.mxu0 0.0
  %264 = vmatpush2.msra.mxu0 0.0
  %265 = vmatprep.subr.mxu0 0.0
  %266 = vmatpush2.msra.mxu0 0.0
  %267 = vmatprep.subr.mxu0 0.0
  %268 = vmatpush2.msra.mxu0 0.0
  %269 = vmatprep.subr.mxu0 0.0
  %270 = vmatpush2.msra.mxu0 0.0
  %271 = vmatprep.subr.mxu0 0.0
  %272 = vmatpush2.msra.mxu0 0.0
  %273 = vmatprep.subr.mxu0 0.0
  %274 = vmatpush2.msra.mxu0 0.0
  %275 = vmatprep.mubr.f32.mxu0 0.0
  %276 = vmatmul.mubr.f32.gmra.mxu0 %v200
  %v277 = vpop.f32.mrf.mxu0
  %v278 = vadd.f32 %v181, %v277
  %v279 = vpop.f32.mrf.mxu0
  %280 = vmatprep.mubr.f32.mxu0 0.0
  %281 = vmatmul.mubr.f32.gmra.mxu0 %v203
  %v282 = vpop.f32.mrf.mxu0
  %v283 = vadd.f32 %v186, %v282
  %v284 = vpop.f32.mrf.mxu0
  %285 = vmatprep.mubr.f32.mxu0 0.0
  %286 = vmatmul.mubr.f32.gmra.mxu0 %v206
  %v287 = vpop.f32.mrf.mxu0
  %v288 = vadd.f32 %v191, %v287
  %v289 = vpop.f32.mrf.mxu0
  %290 = vmatprep.mubr.f32.mxu0 0.0
  %291 = vmatmul.mubr.f32.gmra.mxu0 %v209
  %v292 = vpop.f32.mrf.mxu0
  %v293 = vadd.f32 %v196, %v292
  %v294 = vpop.f32.mrf.mxu0
  %295 = vdwg.mxu0
  %vm296 = vcmp.ge.f32.partialorder %v278, 0.0
  %vm297 = vcmp.ge.f32.partialorder %v283, 0.0
  %vm298 = vcmp.ge.f32.partialorder %v288, 0.0
  %vm299 = vcmp.ge.f32.partialorder %v293, 0.0
  %v300 = vmul.f32 %v278, 0.01
  %v301 = vmul.f32 %v283, 0.01
  %v302 = vmul.f32 %v288, 0.01
  %v303 = vmul.f32 %v293, 0.01
  %v304 = vsel %vm296, %v278, %v300
  %v305 = vsel %vm297, %v283, %v301
  %v306 = vsel %vm298, %v288, %v302
  %v307 = vsel %vm299, %v293, %v303
  %v308 = vld [vmem:[%s5] sm:$0xff]
  %v309 = vld [vmem:[%s6] sm:$0xff]
  %311 = vset.pattern.permute.xlu0 0
  %312 = vperm.xlu0 %311, %v309
  %v313 = vpop.permute.xlu0 %312
  %v316 = vsel %vm198, %v308, 0
  %318 = vmatprep.subr.mxu0 0.0
  %319 = vmatpush1.msra.mxu0 0.0
  %320 = vmatprep.subr.mxu0 0.0
  %321 = vmatpush1.msra.mxu0 0.0
  %322 = vmatprep.subr.mxu0 0.0
  %323 = vmatpush1.msra.mxu0 0.0
  %324 = vmatprep.subr.mxu0 0.0
  %325 = vmatpush1.msra.mxu0 0.0
  %326 = vmatprep.subr.mxu0 0.0
  %327 = vmatpush1.msra.mxu0 0.0
  %328 = vmatprep.subr.mxu0 0.0
  %329 = vmatpush1.msra.mxu0 0.0
  %330 = vmatprep.subr.mxu0 0.0
  %331 = vmatpush1.msra.mxu0 0.0
  %332 = vmatprep.subr.mxu0 0.0
  %333 = vmatpush1.msra.mxu0 0.0
  %334 = vmatprep.subr.mxu0 0.0
  %335 = vmatpush1.msra.mxu0 0.0
  %336 = vmatprep.subr.mxu0 0.0
  %337 = vmatpush1.msra.mxu0 0.0
  %338 = vmatprep.subr.mxu0 0.0
  %339 = vmatpush1.msra.mxu0 0.0
  %340 = vmatprep.subr.mxu0 0.0
  %341 = vmatpush1.msra.mxu0 0.0
  %342 = vmatprep.subr.mxu0 0.0
  %343 = vmatpush1.msra.mxu0 %v307
  %344 = vmatprep.subr.mxu0 0.0
  %345 = vmatpush1.msra.mxu0 %v306
  %346 = vmatprep.subr.mxu0 0.0
  %347 = vmatpush1.msra.mxu0 %v305
  %348 = vmatprep.subr.mxu0 0.0
  %349 = vmatpush1.msra.mxu0 %v304
  %350 = vmatprep.subr.mxu0 0.0
  %351 = vmatpush2.msra.mxu0 0.0
  %352 = vmatprep.subr.mxu0 0.0
  %353 = vmatpush2.msra.mxu0 0.0
  %354 = vmatprep.subr.mxu0 0.0
  %355 = vmatpush2.msra.mxu0 0.0
  %356 = vmatprep.subr.mxu0 0.0
  %357 = vmatpush2.msra.mxu0 0.0
  %358 = vmatprep.subr.mxu0 0.0
  %359 = vmatpush2.msra.mxu0 0.0
  %360 = vmatprep.subr.mxu0 0.0
  %361 = vmatpush2.msra.mxu0 0.0
  %362 = vmatprep.subr.mxu0 0.0
  %363 = vmatpush2.msra.mxu0 0.0
  %364 = vmatprep.subr.mxu0 0.0
  %365 = vmatpush2.msra.mxu0 0.0
  %366 = vmatprep.subr.mxu0 0.0
  %367 = vmatpush2.msra.mxu0 0.0
  %368 = vmatprep.subr.mxu0 0.0
  %369 = vmatpush2.msra.mxu0 0.0
  %370 = vmatprep.subr.mxu0 0.0
  %371 = vmatpush2.msra.mxu0 0.0
  %372 = vmatprep.subr.mxu0 0.0
  %373 = vmatpush2.msra.mxu0 0.0
  %374 = vmatprep.subr.mxu0 0.0
  %375 = vmatpush2.msra.mxu0 0.0
  %376 = vmatprep.subr.mxu0 0.0
  %377 = vmatpush2.msra.mxu0 0.0
  %378 = vmatprep.subr.mxu0 0.0
  %379 = vmatpush2.msra.mxu0 0.0
  %380 = vmatprep.subr.mxu0 0.0
  %381 = vmatpush2.msra.mxu0 0.0
  %382 = vmatprep.mubr.f32.mxu0 0.0
  %383 = vmatmul.mubr.f32.gmra.mxu0 %v316
  %v384 = vpop.f32.mrf.mxu0
  %v385 = vadd.f32 %v313, %v384
  %v386 = vpop.f32.mrf.mxu0
  %387 = vdwg.mxu0
  %v388 = vmax.f32 %v385, 0.0
  %v389 = vand.u32 2147483647, %v385
  %v390 = vsub.f32 0.0, %v389
  %v391 = vmul.f32 %v390, 1.442695
  %v392 = vpow.pop %v391
  %v393 = vadd.f32 %v392, 1.0
  %v394 = vlog2.pop %v393
  %v395 = vmul.f32 %v394, 0.6931472
  %v396 = vmul.f32 -0.5, %v392
  %v397 = vadd.f32 %v396, 1.0
  %v398 = vmul.f32 %v397, %v392
  %v399 = vand.u32 2147483647, %v392
  %vm400 = vcmp.lt.f32.partialorder %v399, 0.0004427343
  %v401 = vsel %vm400, %v398, %v395
  %v402 = vadd.f32 %v388, %v401
  %v403 = vadd.f32 %v402, 1.0
  %vm404 = vcmask 15360
  %405 = vst.msk [vmem:[%s7] sm:$0xff] %vm404, %v403
  %v406 = vsub.f32 %v403, 1.0
  %v407 = vsel %vm404, %v403, 0.0
  %v408 = vrot.slane %v407, 4
  %v409 = vadd.f32 %v407, %v408
  %v410 = vrot.slane %v409, 2
  %v411 = vadd.f32 %v409, %v410
  %v412 = vrot.slane %v411, 1
  %v413 = vadd.f32 %v411, %v412
  %v414 = vrcp.pop %v403
  %v415 = vmul.f32 %v403, %v414
  %v416 = vsub.f32 2.0, %v415
  %v417 = vmul.f32 %v414, %v416
  %v418 = vadd.f32 %v403, 1.0
  %v419 = vmul.f32 %v403, %v418
  %v420 = vrcp.pop %v418
  %v421 = vmul.f32 %v418, %v420
  %v422 = vsub.f32 2.0, %v421
  %v423 = vmul.f32 %v420, %v422
  %v424 = vadd.f32 %v417, %v423
  %v425 = vadd.f32 %v418, 1.0
  %v426 = vmul.f32 %v419, %v425
  %v427 = vrcp.pop %v425
  %v428 = vmul.f32 %v425, %v427
  %v429 = vsub.f32 2.0, %v428
  %v430 = vmul.f32 %v427, %v429
  %v431 = vadd.f32 %v424, %v430
  %v432 = vadd.f32 %v425, 1.0
  %v433 = vmul.f32 %v426, %v432
  %v434 = vrcp.pop %v432
  %v435 = vmul.f32 %v432, %v434
  %v436 = vsub.f32 2.0, %v435
  %v437 = vmul.f32 %v434, %v436
  %v438 = vadd.f32 %v431, %v437
  %v439 = vadd.f32 %v432, 1.0
  %v440 = vlog2.pop %v433
  %v441 = vmul.f32 %v440, 0.6931472
  %v442 = vlog2.pop %v439
  %v443 = vmul.f32 %v442, 0.6931472
  %v444 = vrcp.pop %v439
  %v445 = vmul.f32 %v444, %v444
  %v446 = vsub.f32 %v439, 0.5
  %v447 = vmul.f32 %v446, %v443
  %v448 = vsub.f32 %v447, %v439
  %v449 = vadd.f32 %v448, 0.9189385
  %v450 = vmul.f32 %v445, -0.0005952381
  %v451 = vadd.f32 %v450, 0.0007936508
  %v452 = vmul.f32 %v445, %v451
  %v453 = vadd.f32 %v452, -0.0027777778
  %v454 = vmul.f32 %v445, %v453
  %v455 = vadd.f32 %v454, 0.083333336
  %v456 = vmul.f32 %v444, %v455
  %v457 = vadd.f32 %v449, %v456
  %v458 = vsub.f32 %v457, %v441
  %v459 = vmul.f32 %v444, 0.5
  %v460 = vsub.f32 %v443, %v459
  %v461 = vmul.f32 %v445, 0.003968254
  %v462 = vadd.f32 %v461, -0.008333334
  %v463 = vmul.f32 %v445, %v462
  %v464 = vadd.f32 %v463, 0.083333336
  %v465 = vmul.f32 %v445, %v464
  %v466 = vsub.f32 %v460, %v465
  %v467 = vsub.f32 %v466, %v438
  %v468 = vlog2.pop %v413
  %v469 = vmul.f32 %v468, 0.6931472
  %v470 = vrcp.pop %v413
  %v471 = vmul.f32 %v470, %v470
  %v472 = vsub.f32 %v413, 0.5
  %v473 = vmul.f32 %v472, %v469
  %v474 = vsub.f32 %v473, %v413
  %v475 = vadd.f32 %v474, 0.9189385
  %v476 = vmul.f32 %v471, -0.0005952381
  %v477 = vadd.f32 %v476, 0.0007936508
  %v478 = vmul.f32 %v471, %v477
  %v479 = vadd.f32 %v478, -0.0027777778
  %v480 = vmul.f32 %v471, %v479
  %v481 = vadd.f32 %v480, 0.083333336
  %v482 = vmul.f32 %v470, %v481
  %v483 = vadd.f32 %v475, %v482
  %v484 = vmul.f32 %v470, 0.5
  %v485 = vsub.f32 %v469, %v484
  %v486 = vmul.f32 %v471, 0.003968254
  %v487 = vadd.f32 %v486, -0.008333334
  %v488 = vmul.f32 %v471, %v487
  %v489 = vadd.f32 %v488, 0.083333336
  %v490 = vmul.f32 %v471, %v489
  %v491 = vsub.f32 %v485, %v490
  %v492 = vsel %vm404, %v458, 0.0
  %v493 = vrot.slane %v492, 4
  %v494 = vadd.f32 %v492, %v493
  %v495 = vrot.slane %v494, 2
  %v496 = vadd.f32 %v494, %v495
  %v497 = vrot.slane %v496, 1
  %v498 = vadd.f32 %v496, %v497
  %v499 = vsub.f32 %v498, %v483
  %v500 = vsub.f32 %v413, 8.0
  %v501 = vmul.f32 %v500, %v491
  %v502 = vadd.f32 %v499, %v501
  %v503 = vmul.f32 %v406, %v467
  %v504 = vsel %vm404, %v503, 0.0
  %v505 = vrot.slane %v504, 4
  %v506 = vadd.f32 %v504, %v505
  %v507 = vrot.slane %v506, 2
  %v508 = vadd.f32 %v506, %v507
  %v509 = vrot.slane %v508, 1
  %v510 = vadd.f32 %v508, %v509
  %v511 = vsub.f32 %v502, %v510
  %v512 = vsub.f32 %v483, %v498
  %vm513 = vcmask 8192
  %514 = vst.msk [vmem:[%s8] sm:$0x1] %vm513, %v511
  %515 = vst.msk [vmem:[%s8 + $0x1] sm:$0x1] %vm513, %v512
  // Predicated region
  $region30: #{dirichlet_policy_forward.2} parent=0 // pred_check
    _
  $region31: #{dirichlet_policy_forward.2} parent=0 // pred_check_branch
    %517 = sbr.rel (0) target = $region33
  $region32: #{dirichlet_policy_forward.2} parent=0 // pred_region
    _
  $region33: #{dirichlet_policy_forward.2} parent=0 // pred_fallthru
    _
  // Predicated region
  $region34: #{dirichlet_policy_forward.2} parent=0 // pred_check
    _
  $region35: #{dirichlet_policy_forward.2} parent=0 // pred_check_branch
    %519 = sbr.rel (0) target = $region37
  $region36: #{dirichlet_policy_forward.2} parent=0 // pred_region
    _
  $region37: #{dirichlet_policy_forward.2} parent=0 // pred_fallthru
    _
  // Predicated region
  $region38: #{dirichlet_policy_forward.2} parent=0 // pred_check
    _
  $region39: #{dirichlet_policy_forward.2} parent=0 // pred_check_branch
    %521 = sbr.rel (0) target = $region41
  $region40: #{dirichlet_policy_forward.2} parent=0 // pred_region
    _
  $region41: #{dirichlet_policy_forward.2} parent=0 // pred_fallthru
    _
  // Predicated region
  $region42: #{dirichlet_policy_forward.2} parent=0 // pred_check
    _
  $region43: #{dirichlet_policy_forward.2} parent=0 // pred_check_branch
    %523 = sbr.rel (0) target = $region45
  $region44: #{dirichlet_policy_forward.2} parent=0 // pred_region
    _
  $region45: #{dirichlet_policy_forward.2} parent=0 // pred_fallthru
    _

// kernel: dirichlet_policy_forward.3
$region0: #{dirichlet_policy_forward.3}
  #allocation0 [shape = 'u32[]', space=smem, size = 0x4, offset = 0x4, fixed_abs, tag = 'smem constant byte address 0x4 - core index']
  #allocation1 [shape = 'u32[144,128]{1,0:T(1,128)}', space=vmem, size = 0x12000, scoped, tag = 'internal scratch']
  %s0 = inlined_call_operand.vmem [shape: f32[8,2], index: 0, kind: input, shape index: {}]
  %s1 = inlined_call_operand.vmem [shape: f32[8,2], index: 1, kind: input, shape index: {}]
  %s2 = inlined_call_operand.vmem [shape: f32[1,2], index: 2, kind: input, shape index: {}]
  %s3 = inlined_call_operand.vmem [shape: f32[8,2], index: 3, kind: output, shape index: {0}]
  %s4 = inlined_call_operand.hbm [shape: f32[1,2], index: 4, kind: output, shape index: {1}]
  %5 = xla_tuple %s3, %s4
  %s6 = sld [smem:[#allocation0]]
  $region30: #{dirichlet_policy_forward.3} parent=0
    _
  %s8 = ssub.s32 1, %s6
  %s9 = scalar_select 0, %s8, %s6
  $region1: #{dirichlet_policy_forward.3} parent=0
    #allocation2 [shape = 'u8[512]{0}', space=vmem, size = 0x400, scoped, tag = 'output window, operand 1, single buffered']
    #allocation3 [shape = 's32[1]{0}', space=sflag, size = 0x4, scoped, tag = 'scoped memory for dirichlet_policy_forward.3']
    %10 = vsyncpa [#allocation3], 0
    // Predicated region
    $region2: #{dirichlet_policy_forward.3} parent=1 // pred_check
      _
    $region3: #{dirichlet_policy_forward.3} parent=1 // pred_check_branch
      %12 = sbr.rel (0) target = $region5
    $region4: #{dirichlet_policy_forward.3} parent=1 // pred_region
      _
    $region5: #{dirichlet_policy_forward.3} parent=1 // pred_fallthru
      _
    // Predicated region
    $region6: #{dirichlet_policy_forward.3} parent=1 // pred_check
      _
    $region7: #{dirichlet_policy_forward.3} parent=1 // pred_check_branch
      %14 = sbr.rel (0) target = $region9
    $region8: #{dirichlet_policy_forward.3} parent=1 // pred_region
      _
    $region9: #{dirichlet_policy_forward.3} parent=1 // pred_fallthru
      _
    // Predicated region
    $region10: #{dirichlet_policy_forward.3} parent=1 // pred_check
      _
    $region11: #{dirichlet_policy_forward.3} parent=1 // pred_check_branch
      %16 = sbr.rel (0) target = $region13
    $region12: #{dirichlet_policy_forward.3} parent=1 // pred_region
      _
    $region13: #{dirichlet_policy_forward.3} parent=1 // pred_fallthru
      _
    %v17 = vld [vmem:[%s0] sm:$0xff]
    %v18 = vld [vmem:[%s1] sm:$0xff]
    %vm19 = vcmask 15360
    %v20 = vsel %vm19, %v18, 0.0
    %v21 = vrot.slane %v20, 4
    %v22 = vadd.f32 %v20, %v21
    %v23 = vrot.slane %v22, 2
    %v24 = vadd.f32 %v22, %v23
    %v25 = vrot.slane %v24, 1
    %v26 = vadd.f32 %v24, %v25
    %v27 = vmax.f32 %v26, 1e-30
    %v28 = vrcp.pop %v27
    %v29 = vmul.f32 %v18, %v28
    %30 = vst.msk [vmem:[%s3] sm:$0xff] %vm19, %v29
    %v31 = vmax.f32 %v29, 1e-30
    %v32 = vlog2.pop %v31
    %v33 = vmul.f32 %v32, 0.6931472
    %v34 = vsub.f32 %v17, 1.0
    %v35 = vmul.f32 %v34, %v33
    %v36 = vsel %vm19, %v35, 0.0
    %v37 = vrot.slane %v36, 4
    %v38 = vadd.f32 %v36, %v37
    %v39 = vrot.slane %v38, 2
    %v40 = vadd.f32 %v38, %v39
    %v41 = vrot.slane %v40, 1
    %v42 = vadd.f32 %v40, %v41
    %v43 = vld [vmem:[%s2] sm:$0x1]
    %v44 = vadd.f32 %v42, %v43
    %vm45 = vcmask 8192
    %46 = vst.msk [vmem:[#allocation2] sm:$0x1] %vm45, %v44
    // Predicated region
    $region14: #{dirichlet_policy_forward.3} parent=1 // pred_check
      _
    $region15: #{dirichlet_policy_forward.3} parent=1 // pred_check_branch
      %48 = sbr.rel (0) target = $region17
    $region16: #{dirichlet_policy_forward.3} parent=1 // pred_region
      _
    $region17: #{dirichlet_policy_forward.3} parent=1 // pred_fallthru
      _
    // Predicated region
    $region18: #{dirichlet_policy_forward.3} parent=1 // pred_check
      _
    $region19: #{dirichlet_policy_forward.3} parent=1 // pred_check_branch
      %50 = sbr.rel (0) target = $region21
    $region20: #{dirichlet_policy_forward.3} parent=1 // pred_region
      %s52 = ssub.s32 16, 16
      %53 = vsyncadd [#allocation3], %s52
      %s55 = sshll.u32 [#allocation2], 4
      %s56 = int_to_ptr.vmem [resolvable:$true] %s55
      %58 = dma.vmem_to_hbm [thread:$0]  %s56, 16, %s4, [#allocation3]
    $region21: #{dirichlet_policy_forward.3} parent=1 // pred_fallthru
      _
    // Predicated region
    $region22: #{dirichlet_policy_forward.3} parent=1 // pred_check
      _
    $region23: #{dirichlet_policy_forward.3} parent=1 // pred_check_branch
      %60 = sbr.rel (0) target = $region25
    $region24: #{dirichlet_policy_forward.3} parent=1 // pred_region
      _
    $region25: #{dirichlet_policy_forward.3} parent=1 // pred_fallthru
      _
    // Predicated region
    $region26: #{dirichlet_policy_forward.3} parent=1 // pred_check
      _
    $region27: #{dirichlet_policy_forward.3} parent=1 // pred_check_branch
      %62 = sbr.rel (0) target = $region29
    $region28: #{dirichlet_policy_forward.3} parent=1 // pred_region
      %63 = dma.done [#allocation3], 16
    $region29: #{dirichlet_policy_forward.3} parent=1 // pred_fallthru
      _
    %64 = vsyncpa [#allocation3], 1

</llo_original>
